<compile_context>
chip_gen: v6e
topology: v6e:2x2x1
jax: 0.10.0
libtpu: 0.0.40
codegen_flags: <defaults>
</compile_context>

<pallas_src>
import numpy as np
import jax
import jax.numpy as jnp
from jax.experimental import pallas as pl
from jax.experimental.pallas import tpu as pltpu


_LANE = 128          # TPU lane width: last block dim is always exactly one vreg row
_MAX_ROW_TILE = 1024 # 1024*128*4B = 512 KiB per block per ref


def _cdiv(a: int, b: int) -> int:
    return -(-a // b)


def _choose_tiling(num_elems: int):
    """Return (padded_rows, row_tile) for a flat length-`num_elems` f32 array
    viewed as (rows, _LANE)."""
    rows = max(1, _cdiv(num_elems, _LANE))
    rows = max(8, _cdiv(rows, 8) * 8)                 # sublane multiple of 8
    # Prefer >= 2 grid steps (v7x has 2 TensorCores), cap the tile size.
    half = (rows // 2) // 8 * 8
    row_tile = min(_MAX_ROW_TILE, max(8, half))
    rows_padded = _cdiv(rows, row_tile) * row_tile
    return rows_padded, row_tile


# ----------------------------------------------------------------------------- kernels

def _zrelu_complex_kernel(re_ref, im_ref, or_ref, oi_ref):
    # All refs: (row_tile, 128) f32 in VMEM. Elementwise first-quadrant gate.
    re = re_ref[...]
    im = im_ref[...]
    keep = jnp.logical_and(re >= 0.0, im >= 0.0)   # angle(z) in [0, pi/2]
    zero = jnp.float32(0.0)
    or_ref[...] = jnp.where(keep, re, zero)
    oi_ref[...] = jnp.where(keep, im, zero)


def _relu_kernel(x_ref, o_ref):
    o_ref[...] = jnp.maximum(x_ref[...], 0.0)


# ----------------------------------------------------------------------------- pallas wrappers

def _zrelu_complex_pallas(re2d, im2d, row_tile):
    rows, lane = re2d.shape
    grid = (rows // row_tile,)

    def spec():
        return pl.BlockSpec((row_tile, lane), lambda i: (i, 0))

    return pl.pallas_call(
        _zrelu_complex_kernel,
        out_shape=(
            jax.ShapeDtypeStruct((rows, lane), jnp.float32),
            jax.ShapeDtypeStruct((rows, lane), jnp.float32),
        ),
        grid_spec=pltpu.PrefetchScalarGridSpec(
            num_scalar_prefetch=0,
            grid=grid,
            in_specs=[spec(), spec()],
            out_specs=[spec(), spec()],
        ),
        compiler_params=pltpu.CompilerParams(
            dimension_semantics=("parallel",)
        ),
    )(re2d, im2d)


def _relu_pallas(x2d, row_tile):
    rows, lane = x2d.shape
    grid = (rows // row_tile,)
    return pl.pallas_call(
        _relu_kernel,
        out_shape=jax.ShapeDtypeStruct((rows, lane), jnp.float32),
        grid_spec=pltpu.PrefetchScalarGridSpec(
            num_scalar_prefetch=0,
            grid=grid,
            in_specs=[pl.BlockSpec((row_tile, lane), lambda i: (i, 0))],
            out_specs=pl.BlockSpec((row_tile, lane), lambda i: (i, 0)),
        ),
        compiler_params=pltpu.CompilerParams(
            dimension_semantics=("parallel",)
        ),
    )(x2d)


# ----------------------------------------------------------------------------- public op

def zrelu(x: jax.Array, inplace: bool = False) -> jax.Array:
    """Pallas-backed equivalent of torchcomplex zReLU.forward(x)."""
    # TODO(synk): `inplace` has no meaning under JAX's functional semantics; ignored.
    del inplace
    shape = x.shape
    n = int(np.prod(shape)) if len(shape) > 0 else 1

    rows, row_tile = _choose_tiling(n)
    padded = rows * _LANE

    if jnp.iscomplexobj(x):
        re = jnp.real(x).astype(jnp.float32).reshape(-1)
        im = jnp.imag(x).astype(jnp.float32).reshape(-1)
        if padded != n:
            re = jnp.pad(re, (0, padded - n))
            im = jnp.pad(im, (0, padded - n))
        out_r, out_i = _zrelu_complex_pallas(
            re.reshape(rows, _LANE), im.reshape(rows, _LANE), row_tile
        )
        out_r = out_r.reshape(-1)[:n].reshape(shape)
        out_i = out_i.reshape(-1)[:n].reshape(shape)
        return jax.lax.complex(out_r, out_i)  # complex64
    else:
        orig_dtype = x.dtype
        flat = x.astype(jnp.float32).reshape(-1)
        if padded != n:
            flat = jnp.pad(flat, (0, padded - n))
        out = _relu_pallas(flat.reshape(rows, _LANE), row_tile)
        return out.reshape(-1)[:n].reshape(shape).astype(orig_dtype)


# ----------------------------------------------------------------------------- test

if __name__ == "__main__":
    key = jax.random.PRNGKey(0)
    kr, ki = jax.random.split(key)
    B, C, H, W = 2, 4, 16, 16
    x_real = jax.random.normal(kr, (B, C, H, W), dtype=jnp.float32)
    x_imag = jax.random.normal(ki, (B, C, H, W), dtype=jnp.float32)
    x = jax.lax.complex(x_real, x_imag)  # complex64, NCHW

    out = zrelu(x)
    out = jax.block_until_ready(out)

    # Reference: keep z iff it lies in the closed first quadrant, else 0.
    mask = (x_real >= 0) & (x_imag >= 0)
    ref = jax.lax.complex(
        jnp.where(mask, x_real, 0.0), jnp.where(mask, x_imag, 0.0)
    )
    assert out.shape == x.shape and out.dtype == jnp.complex64
    np.testing.assert_allclose(np.asarray(out), np.asarray(ref), rtol=0, atol=0)

    # Real path (falls back to plain ReLU, matching torch.relu).
    y = jax.block_until_ready(zrelu(x_real))
    np.testing.assert_allclose(
        np.asarray(y), np.asarray(jnp.maximum(x_real, 0.0)), rtol=0, atol=0
    )

    print("KERNEL_OK")
</pallas_src>

<mosaic_0001>
module attributes {stable_mosaic.version = 11 : i64} {
  func.func @_zrelu_complex_kernel(%arg0: i32, %arg1: memref<8x128xf32, #tpu.memory_space<vmem>>, %arg2: memref<8x128xf32, #tpu.memory_space<vmem>>, %arg3: memref<8x128xf32, #tpu.memory_space<vmem>>, %arg4: memref<8x128xf32, #tpu.memory_space<vmem>>) attributes {dimension_semantics = [#tpu.dimension_semantics<parallel>], iteration_bounds = array<i64: 2>, scalar_prefetch = 0 : i64, scratch_operands = 0 : i64, tpu.core_type = #tpu.core_type<tc>, window_params = [{transform_indices = @transform_0, window_bounds = array<i64: 8, 128>}, {transform_indices = @transform_1, window_bounds = array<i64: 8, 128>}, {transform_indices = @transform_2, window_bounds = array<i64: 8, 128>}, {transform_indices = @transform_3, window_bounds = array<i64: 8, 128>}]} {
    %c0 = arith.constant 0 : index
    %c0_0 = arith.constant 0 : index
    %0 = vector.load %arg1[%c0, %c0_0] : memref<8x128xf32, #tpu.memory_space<vmem>>, vector<8x128xf32>
    %c0_1 = arith.constant 0 : index
    %c0_2 = arith.constant 0 : index
    %1 = vector.load %arg2[%c0_1, %c0_2] : memref<8x128xf32, #tpu.memory_space<vmem>>, vector<8x128xf32>
    %cst = arith.constant 0.000000e+00 : f32
    %2 = vector.broadcast %cst : f32 to vector<8x128xf32>
    %3 = arith.cmpf oge, %0, %2 : vector<8x128xf32>
    %cst_3 = arith.constant 0.000000e+00 : f32
    %4 = vector.broadcast %cst_3 : f32 to vector<8x128xf32>
    %5 = arith.cmpf oge, %1, %4 : vector<8x128xf32>
    %6 = arith.andi %3, %5 : vector<8x128xi1>
    %cst_4 = arith.constant 0.000000e+00 : f32
    %7 = vector.broadcast %cst_4 : f32 to vector<8x128xf32>
    %8 = arith.select %6, %0, %7 : vector<8x128xi1>, vector<8x128xf32>
    %c0_5 = arith.constant 0 : index
    %c0_6 = arith.constant 0 : index
    %9 = vector.load %arg3[%c0_5, %c0_6] : memref<8x128xf32, #tpu.memory_space<vmem>>, vector<8x128xf32>
    tpu.vector_store %arg3[%c0_5, %c0_6], %8 {strides = array<i32>} : memref<8x128xf32, #tpu.memory_space<vmem>>, vector<8x128xf32>,
    %cst_7 = arith.constant 0.000000e+00 : f32
    %10 = vector.broadcast %cst_7 : f32 to vector<8x128xf32>
    %11 = arith.select %6, %1, %10 : vector<8x128xi1>, vector<8x128xf32>
    %c0_8 = arith.constant 0 : index
    %c0_9 = arith.constant 0 : index
    %12 = vector.load %arg4[%c0_8, %c0_9] : memref<8x128xf32, #tpu.memory_space<vmem>>, vector<8x128xf32>
    tpu.vector_store %arg4[%c0_8, %c0_9], %11 {strides = array<i32>} : memref<8x128xf32, #tpu.memory_space<vmem>>, vector<8x128xf32>,
    return
  }
  func.func @transform_0(%arg0: i32) -> (i32, i32) {
    %c0_i32 = arith.constant 0 : i32
    %c0_i32_0 = arith.constant 0 : i32
    return %arg0, %c0_i32 : i32, i32
  }
  func.func @transform_1(%arg0: i32) -> (i32, i32) {
    %c0_i32 = arith.constant 0 : i32
    %c0_i32_0 = arith.constant 0 : i32
    return %arg0, %c0_i32 : i32, i32
  }
  func.func @transform_2(%arg0: i32) -> (i32, i32) {
    %c0_i32 = arith.constant 0 : i32
    %c0_i32_0 = arith.constant 0 : i32
    return %arg0, %c0_i32 : i32, i32
  }
  func.func @transform_3(%arg0: i32) -> (i32, i32) {
    %c0_i32 = arith.constant 0 : i32
    %c0_i32_0 = arith.constant 0 : i32
    return %arg0, %c0_i32 : i32, i32
  }
}

</mosaic_0001>

<llo_original>
// kernel: tpu_custom_call.1
$region0: #{tpu_custom_call.1}
  #allocation0 [shape = 'u32[]', space=smem, size = 0x4, offset = 0x4, fixed_abs, tag = 'smem constant byte address 0x4 - core index']
  #allocation1 [shape = 'u32[144,128]{1,0:T(1,128)}', space=vmem, size = 0x12000, scoped, tag = 'internal scratch']
  %s0 = inlined_call_operand.hbm [shape: f32[16,128], index: 0, kind: input, shape index: {}]
  %s1 = inlined_call_operand.hbm [shape: f32[16,128], index: 1, kind: input, shape index: {}]
  %s2 = inlined_call_operand.hbm [shape: f32[16,128], index: 2, kind: output, shape index: {0}]
  %s3 = inlined_call_operand.hbm [shape: f32[16,128], index: 3, kind: output, shape index: {1}]
  %4 = xla_tuple %s2, %s3
  %s5 = sld [smem:[#allocation0]]
  $region57: #{tpu_custom_call.1} parent=0
    _
  %s7 = ssub.s32 1, %s5
  %s8 = scalar_select 0, %s7, %s5
  $region1: #{tpu_custom_call.1} parent=0
    #allocation2 [shape = 'u8[8192]{0}', space=vmem, size = 0x2000, scoped, tag = 'input window, operand 0']
    #allocation3 [shape = 's32[2]{0}', space=sflag, size = 0x8, scoped, tag = 'scoped memory for tpu_custom_call.1']
    #allocation4 [shape = 's32[2]{0}', space=sflag, size = 0x8, scoped, tag = 'scoped memory for tpu_custom_call.1']
    #allocation5 [shape = 'u8[8192]{0}', space=vmem, size = 0x2000, scoped, tag = 'input window, operand 1']
    #allocation6 [shape = 's32[2]{0}', space=sflag, size = 0x8, scoped, tag = 'scoped memory for tpu_custom_call.1']
    #allocation7 [shape = 'u8[8192]{0}', space=vmem, size = 0x2000, scoped, tag = 'output window, operand 0']
    #allocation8 [shape = 'u8[8192]{0}', space=vmem, size = 0x2000, scoped, tag = 'output window, operand 1']
    #allocation9 [shape = 's32[2]{0}', space=sflag, size = 0x8, scoped, tag = 'scoped memory for tpu_custom_call.1']
    %9 = vsyncpa [#allocation3], 0
    %s10 = scalar_lea.sflag [#allocation3], 1
    %11 = vsyncpa %s10, 0
    %12 = vsyncpa [#allocation6], 0
    %s13 = scalar_lea.sflag [#allocation6], 1
    %14 = vsyncpa %s13, 0
    %15 = vsyncpa [#allocation4], 0
    %s16 = scalar_lea.sflag [#allocation4], 1
    %17 = vsyncpa %s16, 0
    %18 = vsyncpa [#allocation9], 0
    %s19 = scalar_lea.sflag [#allocation9], 1
    %20 = vsyncpa %s19, 0
    loop: start=0, step=1, limit=4
    $region2: #{tpu_custom_call.1} parent=1 // loop_pre_header
      _
    $region3: #{tpu_custom_call.1} parent=1 // loop_header
      %s22 = sphi 0, %s26
      %p23 = scmp.ge.s32.totalorder %s22, 4
      %s32 = sphi 0, %s34
      %s35 = sphi 0, %s32
      %s36 = sphi 0, %s35
      %s52 = sphi 0, %s36
      %s58 = sphi 0, %s60
      %s61 = sphi 0, %s58
      %s62 = sphi 0, %s61
      %s78 = sphi 0, %s62
      %s84 = sphi 0, %s86
      %s87 = sphi 0, %s84
      %s88 = sphi 0, %s87
      %s104 = sphi 0, %s88
      %s110 = sphi 0, %s112
      %s113 = sphi 0, %s110
      %s114 = sphi 0, %s113
      %s130 = sphi 0, %s114
    $region4: #{tpu_custom_call.1} parent=1 // loop_header_branch
      %25 = sbr.rel (%p23) target = $region8
    $region5: #{tpu_custom_call.1} parent=1 // loop_body
      %s27 = ssub.s32 %s22, 1
      %s28 = ssub.s32 %s22, 2
      %s29 = sadd.s32 %s22, 1
      %s30 = ssub.s32 %s22, %s29
      %p31 = scmp.eq.s32.totalorder %s30, 0
      %s33 = sadd.s32 %s32, 1
      %s34 = scalar_select %p31, %s32, %s33
      %p37 = pneg %p31
      %p38 = scmp.eq.s32.totalorder %s22, 1
      %p39 = por %p37, %p38
      %p40 = scmp.ne.s32.totalorder %s32, %s35
      %p41 = scmp.eq.s32.totalorder %s22, 0
      %p42 = por %p40, %p41
      %p43 = scmp.ne.s32.totalorder %s32, %s35
      %p44 = scmp.eq.s32.totalorder %s27, 1
      %p45 = por %p43, %p44
      %p46 = scmp.ne.s32.totalorder %s35, %s36
      %p47 = scmp.eq.s32.totalorder %s27, 0
      %p48 = por %p46, %p47
      %p49 = scmp.ne.s32.totalorder %s35, %s36
      %p50 = scmp.eq.s32.totalorder %s28, 1
      %p51 = por %p49, %p50
      %p53 = scmp.ne.s32.totalorder %s36, %s52
      %p54 = scmp.eq.s32.totalorder %s28, 0
      %p55 = por %p53, %p54
      %s56 = ssub.s32 %s22, %s29
      %p57 = scmp.eq.s32.totalorder %s56, 0
      %s59 = sadd.s32 %s58, 1
      %s60 = scalar_select %p57, %s58, %s59
      %p63 = pneg %p57
      %p64 = scmp.eq.s32.totalorder %s22, 1
      %p65 = por %p63, %p64
      %p66 = scmp.ne.s32.totalorder %s58, %s61
      %p67 = scmp.eq.s32.totalorder %s22, 0
      %p68 = por %p66, %p67
      %p69 = scmp.ne.s32.totalorder %s58, %s61
      %p70 = scmp.eq.s32.totalorder %s27, 1
      %p71 = por %p69, %p70
      %p72 = scmp.ne.s32.totalorder %s61, %s62
      %p73 = scmp.eq.s32.totalorder %s27, 0
      %p74 = por %p72, %p73
      %p75 = scmp.ne.s32.totalorder %s61, %s62
      %p76 = scmp.eq.s32.totalorder %s28, 1
      %p77 = por %p75, %p76
      %p79 = scmp.ne.s32.totalorder %s62, %s78
      %p80 = scmp.eq.s32.totalorder %s28, 0
      %p81 = por %p79, %p80
      %s82 = ssub.s32 %s22, %s29
      %p83 = scmp.eq.s32.totalorder %s82, 0
      %s85 = sadd.s32 %s84, 1
      %s86 = scalar_select %p83, %s84, %s85
      %p89 = pneg %p83
      %p90 = scmp.eq.s32.totalorder %s22, 1
      %p91 = por %p89, %p90
      %p92 = scmp.ne.s32.totalorder %s84, %s87
      %p93 = scmp.eq.s32.totalorder %s22, 0
      %p94 = por %p92, %p93
      %p95 = scmp.ne.s32.totalorder %s84, %s87
      %p96 = scmp.eq.s32.totalorder %s27, 1
      %p97 = por %p95, %p96
      %p98 = scmp.ne.s32.totalorder %s87, %s88
      %p99 = scmp.eq.s32.totalorder %s27, 0
      %p100 = por %p98, %p99
      %p101 = scmp.ne.s32.totalorder %s87, %s88
      %p102 = scmp.eq.s32.totalorder %s28, 1
      %p103 = por %p101, %p102
      %p105 = scmp.ne.s32.totalorder %s88, %s104
      %p106 = scmp.eq.s32.totalorder %s28, 0
      %p107 = por %p105, %p106
      %s108 = ssub.s32 %s22, %s29
      %p109 = scmp.eq.s32.totalorder %s108, 0
      %s111 = sadd.s32 %s110, 1
      %s112 = scalar_select %p109, %s110, %s111
      %p115 = pneg %p109
      %p116 = scmp.eq.s32.totalorder %s22, 1
      %p117 = por %p115, %p116
      %p118 = scmp.ne.s32.totalorder %s110, %s113
      %p119 = scmp.eq.s32.totalorder %s22, 0
      %p120 = por %p118, %p119
      %p121 = scmp.ne.s32.totalorder %s110, %s113
      %p122 = scmp.eq.s32.totalorder %s27, 1
      %p123 = por %p121, %p122
      %p124 = scmp.ne.s32.totalorder %s113, %s114
      %p125 = scmp.eq.s32.totalorder %s27, 0
      %p126 = por %p124, %p125
      %p127 = scmp.ne.s32.totalorder %s113, %s114
      %p128 = scmp.eq.s32.totalorder %s28, 1
      %p129 = por %p127, %p128
      %p131 = scmp.ne.s32.totalorder %s114, %s130
      %p132 = scmp.eq.s32.totalorder %s28, 0
      %p133 = por %p131, %p132
      %p134 = scmp.le.s32.totalorder 1, %s22
      %p135 = scmp.lt.s32.totalorder %s22, 3
      %p136 = pnand %p134, %p135
      %p137 = pneg %p136
      // Predicated region
      $region9: #{tpu_custom_call.1} parent=5 // pred_check
        _
      $region10: #{tpu_custom_call.1} parent=5 // pred_check_branch
        %139 = sbr.rel (%p136) target = $region12
      $region11: #{tpu_custom_call.1} parent=5 // pred_region
        %s140 = ssub.s32 %s22, 1
      $region12: #{tpu_custom_call.1} parent=5 // pred_fallthru
        _
      %p141 = scmp.lt.s32.totalorder %s22, 2
      // Predicated region
      $region13: #{tpu_custom_call.1} parent=5 // pred_check
        %p142 = pneg %p141
      $region14: #{tpu_custom_call.1} parent=5 // pred_check_branch
        %144 = sbr.rel (%p142) target = $region16
      $region15: #{tpu_custom_call.1} parent=5 // pred_region
        // Predicated region
        $region17: #{tpu_custom_call.1} parent=15 // pred_check
          %p145 = pneg %p42
        $region18: #{tpu_custom_call.1} parent=15 // pred_check_branch
          %147 = sbr.rel (%p145) target = $region20
        $region19: #{tpu_custom_call.1} parent=15 // pred_region
          %s148 = sand.u32 %s32, 1
          %s149 = scalar_lea.sflag [#allocation3], %s148
          %s150 = sand.u32 %s32, 1
          %s151 = smul.addr %s150, 8
          %s152 = scalar_lea.vmem [#allocation2], %s151
          %s154 = ssub.s32 128, 128
          %155 = vsyncadd %s149, %s154
          %s156 = smul.addr %s22, 128
          %s157 = scalar_lea.hbm %s0, %s156
          %s159 = sshll.u32 %s152, 4
          %s160 = int_to_ptr.vmem [resolvable:$true] %s159
          %162 = dma.hbm_to_vmem [thread:$0]  %s157, 128, %s160, %s149
        $region20: #{tpu_custom_call.1} parent=15 // pred_fallthru
          _
        // Predicated region
        $region21: #{tpu_custom_call.1} parent=15 // pred_check
          %p163 = pneg %p68
        $region22: #{tpu_custom_call.1} parent=15 // pred_check_branch
          %165 = sbr.rel (%p163) target = $region24
        $region23: #{tpu_custom_call.1} parent=15 // pred_region
          %s166 = sand.u32 %s58, 1
          %s167 = scalar_lea.sflag [#allocation6], %s166
          %s168 = sand.u32 %s58, 1
          %s169 = smul.addr %s168, 8
          %s170 = scalar_lea.vmem [#allocation5], %s169
          %s172 = ssub.s32 128, 128
          %173 = vsyncadd %s167, %s172
          %s174 = smul.addr %s22, 128
          %s175 = scalar_lea.hbm %s1, %s174
          %s177 = sshll.u32 %s170, 4
          %s178 = int_to_ptr.vmem [resolvable:$true] %s177
          %180 = dma.hbm_to_vmem [thread:$0]  %s175, 128, %s178, %s167
        $region24: #{tpu_custom_call.1} parent=15 // pred_fallthru
          _
      $region16: #{tpu_custom_call.1} parent=5 // pred_fallthru
        _
      %p181 = scmp.le.s32.totalorder 1, %s22
      %p182 = scmp.lt.s32.totalorder %s22, 3
      %p183 = pnand %p181, %p182
      %p184 = pneg %p183
      // Predicated region
      $region25: #{tpu_custom_call.1} parent=5 // pred_check
        _
      $region26: #{tpu_custom_call.1} parent=5 // pred_check_branch
        %186 = sbr.rel (%p183) target = $region28
      $region27: #{tpu_custom_call.1} parent=5 // pred_region
        %s187 = ssub.s32 %s22, 1
        %s188 = sand.u32 %s35, 1
        %s189 = scalar_lea.sflag [#allocation3], %s188
        %s190 = sand.u32 %s35, 1
        %s191 = smul.addr %s190, 8
        %s192 = scalar_lea.vmem [#allocation2], %s191
        // Predicated region
        $region29: #{tpu_custom_call.1} parent=27 // pred_check
          %p193 = pneg %p48
        $region30: #{tpu_custom_call.1} parent=27 // pred_check_branch
          %195 = sbr.rel (%p193) target = $region32
        $region31: #{tpu_custom_call.1} parent=27 // pred_region
          %196 = dma.done %s189, 128
        $region32: #{tpu_custom_call.1} parent=27 // pred_fallthru
          _
        %s197 = sand.u32 %s61, 1
        %s198 = scalar_lea.sflag [#allocation6], %s197
        %s199 = sand.u32 %s61, 1
        %s200 = smul.addr %s199, 8
        %s201 = scalar_lea.vmem [#allocation5], %s200
        // Predicated region
        $region33: #{tpu_custom_call.1} parent=27 // pred_check
          %p202 = pneg %p74
        $region34: #{tpu_custom_call.1} parent=27 // pred_check_branch
          %204 = sbr.rel (%p202) target = $region36
        $region35: #{tpu_custom_call.1} parent=27 // pred_region
          %205 = dma.done %s198, 128
        $region36: #{tpu_custom_call.1} parent=27 // pred_fallthru
          _
        %s206 = sand.u32 %s35, 1
        %s207 = scalar_lea.sflag [#allocation3], %s206
        %s208 = sand.u32 %s35, 1
        %s209 = smul.addr %s208, 8
        %s210 = scalar_lea.vmem [#allocation2], %s209
        %p211 = pneg %p48
        %p212 = pneg %p45
        %s213 = sand.u32 %s61, 1
        %s214 = scalar_lea.sflag [#allocation6], %s213
        %s215 = sand.u32 %s61, 1
        %s216 = smul.addr %s215, 8
        %s217 = scalar_lea.vmem [#allocation5], %s216
        %p218 = pneg %p74
        %p219 = pneg %p71
        %p220 = pneg %p100
        %p221 = pneg %p97
        %s222 = sand.u32 %s87, 1
        %s223 = scalar_lea.sflag [#allocation4], %s222
        %s224 = sand.u32 %s87, 1
        %s225 = smul.addr %s224, 8
        %s226 = scalar_lea.vmem [#allocation7], %s225
        %p227 = pneg %p126
        %p228 = pneg %p123
        %s229 = sand.u32 %s113, 1
        %s230 = scalar_lea.sflag [#allocation9], %s229
        %s231 = sand.u32 %s113, 1
        %s232 = smul.addr %s231, 8
        %s233 = scalar_lea.vmem [#allocation8], %s232
        %v234 = vld [vmem:[%s192] sm:$0xff]
        %v235 = vld [vmem:[%s201] sm:$0xff]
        %vm236 = vcmp.ge.f32.partialorder %v234, 0.0
        %vm237 = vcmp.ge.f32.partialorder %v235, 0.0
        %vm238 = vmand %vm236, %vm237
        %v239 = vsel %vm238, %v234, 0.0
        %240 = vst [vmem:[%s226] sm:$0xff] %v239
        %v241 = vsel %vm238, %v235, 0.0
        %242 = vst [vmem:[%s233] sm:$0xff] %v241
        %s243 = sand.u32 %s87, 1
        %s244 = scalar_lea.sflag [#allocation4], %s243
        %s245 = sand.u32 %s87, 1
        %s246 = smul.addr %s245, 8
        %s247 = scalar_lea.vmem [#allocation7], %s246
        %s248 = sand.u32 %s113, 1
        %s249 = scalar_lea.sflag [#allocation9], %s248
        %s250 = sand.u32 %s113, 1
        %s251 = smul.addr %s250, 8
        %s252 = scalar_lea.vmem [#allocation8], %s251
        // Predicated region
        $region37: #{tpu_custom_call.1} parent=27 // pred_check
          %p253 = pneg %p97
        $region38: #{tpu_custom_call.1} parent=27 // pred_check_branch
          %255 = sbr.rel (%p253) target = $region40
        $region39: #{tpu_custom_call.1} parent=27 // pred_region
          %s257 = ssub.s32 128, 128
          %258 = vsyncadd %s244, %s257
          %s259 = smul.addr %s27, 128
          %s260 = scalar_lea.hbm %s2, %s259
          %s262 = sshll.u32 %s247, 4
          %s263 = int_to_ptr.vmem [resolvable:$true] %s262
          %265 = dma.vmem_to_hbm [thread:$0]  %s263, 128, %s260, %s244
        $region40: #{tpu_custom_call.1} parent=27 // pred_fallthru
          _
        // Predicated region
        $region41: #{tpu_custom_call.1} parent=27 // pred_check
          %p266 = pneg %p123
        $region42: #{tpu_custom_call.1} parent=27 // pred_check_branch
          %268 = sbr.rel (%p266) target = $region44
        $region43: #{tpu_custom_call.1} parent=27 // pred_region
          %s270 = ssub.s32 128, 128
          %271 = vsyncadd %s249, %s270
          %s272 = smul.addr %s27, 128
          %s273 = scalar_lea.hbm %s3, %s272
          %s275 = sshll.u32 %s252, 4
          %s276 = int_to_ptr.vmem [resolvable:$true] %s275
          %278 = dma.vmem_to_hbm [thread:$0]  %s276, 128, %s273, %s249
        $region44: #{tpu_custom_call.1} parent=27 // pred_fallthru
          _
      $region28: #{tpu_custom_call.1} parent=5 // pred_fallthru
        _
      %p279 = scmp.le.s32.totalorder 2, %s22
      // Predicated region
      $region45: #{tpu_custom_call.1} parent=5 // pred_check
        %p280 = pneg %p279
      $region46: #{tpu_custom_call.1} parent=5 // pred_check_branch
        %282 = sbr.rel (%p280) target = $region48
      $region47: #{tpu_custom_call.1} parent=5 // pred_region
        %s283 = ssub.s32 %s22, 2
        // Predicated region
        $region49: #{tpu_custom_call.1} parent=47 // pred_check
          %p284 = pneg %p103
        $region50: #{tpu_custom_call.1} parent=47 // pred_check_branch
          %286 = sbr.rel (%p284) target = $region52
        $region51: #{tpu_custom_call.1} parent=47 // pred_region
          %s287 = sand.u32 %s88, 1
          %s288 = scalar_lea.sflag [#allocation4], %s287
          %s289 = sand.u32 %s88, 1
          %s290 = smul.addr %s289, 8
          %s291 = scalar_lea.vmem [#allocation7], %s290
          %292 = dma.done %s288, 128
        $region52: #{tpu_custom_call.1} parent=47 // pred_fallthru
          _
        // Predicated region
        $region53: #{tpu_custom_call.1} parent=47 // pred_check
          %p293 = pneg %p129
        $region54: #{tpu_custom_call.1} parent=47 // pred_check_branch
          %295 = sbr.rel (%p293) target = $region56
        $region55: #{tpu_custom_call.1} parent=47 // pred_region
          %s296 = sand.u32 %s114, 1
          %s297 = scalar_lea.sflag [#allocation9], %s296
          %s298 = sand.u32 %s114, 1
          %s299 = smul.addr %s298, 8
          %s300 = scalar_lea.vmem [#allocation8], %s299
          %301 = dma.done %s297, 128
        $region56: #{tpu_custom_call.1} parent=47 // pred_fallthru
          _
      $region48: #{tpu_custom_call.1} parent=5 // pred_fallthru
        _
    $region6: #{tpu_custom_call.1} parent=1 // loop_footer
      %s26 = sadd.s32 1, %s22
    $region7: #{tpu_custom_call.1} parent=1 // loop_footer_branch
      %21 = sbr.rel target = $region3
    $region8: #{tpu_custom_call.1} parent=1 // loop_exit
      _
    %302 = vsyncpa [#allocation3], 1
    %s303 = scalar_lea.sflag [#allocation3], 1
    %304 = vsyncpa %s303, 1
    %305 = vsyncpa [#allocation6], 1
    %s306 = scalar_lea.sflag [#allocation6], 1
    %307 = vsyncpa %s306, 1
    %308 = vsyncpa [#allocation4], 1
    %s309 = scalar_lea.sflag [#allocation4], 1
    %310 = vsyncpa %s309, 1
    %311 = vsyncpa [#allocation9], 1
    %s312 = scalar_lea.sflag [#allocation9], 1
    %313 = vsyncpa %s312, 1

</llo_original>
